<compile_context>
chip_gen: v6e
topology: v6e:2x2x1
jax: 0.10.0
libtpu: 0.0.40
codegen_flags: <defaults>
</compile_context>

<pallas_src>
import math
import functools

import jax
import jax.numpy as jnp
from jax.experimental import pallas as pl
from jax.experimental.pallas import tpu as pltpu


def _build_pe_table(max_len: int, d_model: int) -> jnp.ndarray:
    """Same formula as the PyTorch __init__ (deterministic, no params)."""
    position = jnp.arange(0, max_len, dtype=jnp.float32)[:, None]            # (L, 1)
    div_term = jnp.exp(
        jnp.arange(0, d_model, 2, dtype=jnp.float32)
        * (-(math.log(10000.0) / d_model))
    )                                                                        # (D/2,)
    ang = position * div_term                                                # (L, D/2)
    # interleave sin/cos -> pe[:, 0::2] = sin, pe[:, 1::2] = cos
    pe = jnp.stack([jnp.sin(ang), jnp.cos(ang)], axis=-1).reshape(max_len, d_model)
    return pe.astype(jnp.float32)


# ---------------------------------------------------------------------------
# Kernels (operate on lane-dense 2-D tiles: x (tb, tn), pe (1, tn))
# ---------------------------------------------------------------------------

def _pe_add_kernel(x_ref, pe_ref, o_ref):
    # (tb, tn) + (1, tn): implicit sublane broadcast, dtype-native add.
    o_ref[...] = x_ref[...] + pe_ref[...]


def _pe_add_dropout_kernel(x_ref, pe_ref, bits_ref, o_ref, *, threshold: int,
                           scale: float):
    y = x_ref[...] + pe_ref[...]
    # keep w.p. (1 - p): integer threshold compare on raw uint32 bits
    keep = bits_ref[...] >= jnp.uint32(threshold)
    o_ref[...] = jnp.where(keep, y, jnp.zeros_like(y)) * jnp.asarray(scale, y.dtype)


# ---------------------------------------------------------------------------
# Tiling heuristics
# ---------------------------------------------------------------------------

def _choose_tiles(rows: int, cols: int, itemsize: int):
    """Pick a lane-dense (tb, tn) tile.

    tn is the full flattened row (always layout-legal) or a multiple of 128;
    tb is the full batch (when small) or a multiple of 8.  Targets ~2 MiB per
    operand tile so double-buffered x/out/bits/pe stay far below v7x's 64 MiB
    VMEM while still large enough to sit near the HBM roofline.
    """
    tile_budget = 2 * 1024 * 1024  # bytes per operand tile (each double-buffered)

    if rows * cols * itemsize <= tile_budget:
        return rows, cols                          # whole tensor in one block

    min_rows = rows if rows <= 8 else 8
    if min_rows * cols * itemsize <= tile_budget:
        tn = cols                                  # full lane width fits
        tb = (tile_budget // (cols * itemsize)) // 8 * 8
        tb = rows if tb >= rows else max(8, tb)
    else:
        tb = min_rows                              # == rows (<=8) or 8
        tn = max(128, (tile_budget // (tb * itemsize)) // 128 * 128)
    return tb, tn


# ---------------------------------------------------------------------------
# Wrapper
# ---------------------------------------------------------------------------

@functools.partial(jax.jit, static_argnames=("p", "training", "max_len"))
def positional_encoding(x, key=None, *, p: float = 0.1, training: bool = False,
                        max_len: int = 5000):
    """x: (batch, seq, d_model).  Returns dropout(x + pe[:seq])."""
    B, S, D = x.shape
    assert S <= max_len and D % 2 == 0

    cols = S * D
    # pe built once (parameter setup, like PyTorch __init__), cast to x.dtype
    # so the kernel math is dtype-native (bf16 on v6e/v7x, f32 otherwise).
    pe = _build_pe_table(max_len, D)[:S].reshape(1, cols).astype(x.dtype)
    x2 = x.reshape(B, cols)                        # lane-dense layout

    itemsize = jnp.dtype(x.dtype).itemsize
    tb, tn = _choose_tiles(B, cols, itemsize)
    grid = (pl.cdiv(B, tb), pl.cdiv(cols, tn))

    x_spec = pl.BlockSpec((tb, tn), lambda i, j: (i, j))
    pe_spec = pl.BlockSpec((1, tn), lambda i, j: (0, j))
    out_spec = pl.BlockSpec((tb, tn), lambda i, j: (i, j))

    apply_dropout = bool(training) and p > 0.0
    if apply_dropout:
        assert p < 1.0
        # RNG in the wrapper (portable; no TPU-only prng primitives in-kernel).
        bits = jax.random.bits(key, (B, cols), dtype=jnp.uint32)
        threshold = min(int(round(p * float(1 << 32))), (1 << 32) - 1)
        kernel = functools.partial(_pe_add_dropout_kernel,
                                   threshold=threshold, scale=1.0 / (1.0 - p))
        in_specs = [x_spec, pe_spec, x_spec]       # bits share x's tiling
        operands = (x2, pe, bits)
        bits_tile_bytes = tb * tn * 4
    else:
        kernel = _pe_add_kernel
        in_specs = [x_spec, pe_spec]
        operands = (x2, pe)
        bits_tile_bytes = 0

    # Explicit VMEM budget with headroom; stays under v7x's 64 MiB.
    tile_x = tb * tn * itemsize
    tile_pe = tn * itemsize
    vmem_needed = 2 * (2 * tile_x + bits_tile_bytes + tile_pe)
    vmem_limit = int(min(48 * 2**20, max(32 * 2**20, 4 * vmem_needed)))

    out2 = pl.pallas_call(
        kernel,
        out_shape=jax.ShapeDtypeStruct((B, cols), x.dtype),
        grid=grid,
        in_specs=in_specs,
        out_specs=out_spec,
        compiler_params=pltpu.CompilerParams(
            dimension_semantics=("parallel", "parallel"),
            vmem_limit_bytes=vmem_limit,
        ),
    )(*operands)

    return out2.reshape(B, S, D)


# ---------------------------------------------------------------------------
# Self-test
# ---------------------------------------------------------------------------

if __name__ == "__main__":
    key = jax.random.PRNGKey(0)
    kx, kdrop = jax.random.split(key)

    B, S, D = 2, 8, 32
    x = jax.random.normal(kx, (B, S, D), dtype=jnp.float32)

    # --- eval mode (dropout = identity): bit-exact vs pure-JAX reference ---
    out_eval = positional_encoding(x, None, p=0.1, training=False, max_len=64)
    out_eval = jax.block_until_ready(out_eval)

    ref = x + _build_pe_table(64, D)[None, :S, :]
    assert out_eval.shape == (B, S, D)
    assert jnp.allclose(out_eval, ref, atol=1e-6, rtol=1e-6), "mismatch vs reference"

    # --- train mode (inverted dropout with in-kernel threshold compare) ---
    p = 0.1
    out_train = positional_encoding(x, kdrop, p=p, training=True, max_len=64)
    out_train = jax.block_until_ready(out_train)
    assert out_train.shape == (B, S, D)
    assert bool(jnp.all(jnp.isfinite(out_train)))
    # dropped entries are exactly zero; kept entries equal ref / (1 - p)
    scale = 1.0 / (1.0 - p)
    kept = out_train != 0
    assert bool(jnp.allclose(jnp.where(kept, out_train, ref * scale), ref * scale,
                             atol=1e-5, rtol=1e-5))

    print("KERNEL_OK")
</pallas_src>

<mosaic_0001>
module attributes {stable_mosaic.version = 11 : i64} {
  func.func @_pe_add_kernel(%arg0: i32, %arg1: i32, %arg2: memref<2x256xf32, #tpu.memory_space<vmem>>, %arg3: memref<1x256xf32, #tpu.memory_space<vmem>>, %arg4: memref<2x256xf32, #tpu.memory_space<vmem>>) attributes {dimension_semantics = [#tpu.dimension_semantics<parallel>, #tpu.dimension_semantics<parallel>], iteration_bounds = array<i64: 1, 1>, scalar_prefetch = 0 : i64, scratch_operands = 0 : i64, tpu.core_type = #tpu.core_type<tc>, window_params = [{transform_indices = @transform_0, window_bounds = array<i64: 2, 256>}, {transform_indices = @transform_1, window_bounds = array<i64: 1, 256>}, {transform_indices = @transform_2, window_bounds = array<i64: 2, 256>}]} {
    %c0 = arith.constant 0 : index
    %c0_0 = arith.constant 0 : index
    %0 = vector.load %arg2[%c0, %c0_0] : memref<2x256xf32, #tpu.memory_space<vmem>>, vector<2x256xf32>
    %c0_1 = arith.constant 0 : index
    %c0_2 = arith.constant 0 : index
    %1 = vector.load %arg3[%c0_1, %c0_2] : memref<1x256xf32, #tpu.memory_space<vmem>>, vector<1x256xf32>
    %2 = vector.broadcast %1 : vector<1x256xf32> to vector<2x256xf32>
    %3 = arith.addf %0, %2 : vector<2x256xf32>
    %c0_3 = arith.constant 0 : index
    %c0_4 = arith.constant 0 : index
    %4 = vector.load %arg4[%c0_3, %c0_4] : memref<2x256xf32, #tpu.memory_space<vmem>>, vector<2x256xf32>
    tpu.vector_store %arg4[%c0_3, %c0_4], %3 {strides = array<i32>} : memref<2x256xf32, #tpu.memory_space<vmem>>, vector<2x256xf32>,
    return
  }
  func.func @transform_0(%arg0: i32, %arg1: i32) -> (i32, i32) {
    %c0_i32 = arith.constant 0 : i32
    return %arg0, %arg1 : i32, i32
  }
  func.func @transform_1(%arg0: i32, %arg1: i32) -> (i32, i32) {
    %c0_i32 = arith.constant 0 : i32
    %c0_i32_0 = arith.constant 0 : i32
    return %c0_i32, %arg1 : i32, i32
  }
  func.func @transform_2(%arg0: i32, %arg1: i32) -> (i32, i32) {
    %c0_i32 = arith.constant 0 : i32
    return %arg0, %arg1 : i32, i32
  }
}

</mosaic_0001>

<llo_original>
// kernel: positional_encoding.1
$region0: #{positional_encoding.1}
  #allocation0 [shape = 'u32[]', space=smem, size = 0x4, offset = 0x4, fixed_abs, tag = 'smem constant byte address 0x4 - core index']
  #allocation1 [shape = 'u32[144,128]{1,0:T(1,128)}', space=vmem, size = 0x12000, scoped, tag = 'internal scratch']
  %s0 = inlined_call_operand.vmem [shape: f32[2,256], index: 0, kind: input, shape index: {}]
  %s1 = inlined_call_operand.vmem [shape: f32[1,256], index: 1, kind: input, shape index: {}]
  %s2 = inlined_call_operand.vmem [shape: f32[2,256], index: 2, kind: output, shape index: {}]
  %s3 = sld [smem:[#allocation0]]
  $region18: #{positional_encoding.1} parent=0
    _
  %s5 = ssub.s32 1, %s3
  %s6 = scalar_select 0, %s5, %s3
  // Predicated region
  $region2: #{positional_encoding.1} parent=0 // pred_check
    _
  $region3: #{positional_encoding.1} parent=0 // pred_check_branch
    %8 = sbr.rel (0) target = $region5
  $region4: #{positional_encoding.1} parent=0 // pred_region
    _
  $region5: #{positional_encoding.1} parent=0 // pred_fallthru
    _
  // Predicated region
  $region6: #{positional_encoding.1} parent=0 // pred_check
    _
  $region7: #{positional_encoding.1} parent=0 // pred_check_branch
    %10 = sbr.rel (0) target = $region9
  $region8: #{positional_encoding.1} parent=0 // pred_region
    _
  $region9: #{positional_encoding.1} parent=0 // pred_fallthru
    _
  %v11 = vld [vmem:[%s0] sm:$0xf]
  %v12 = vld [vmem:[%s1] sm:$0x3]
  %v14 = vlaneseq
  %v15 = vshrl.u32 %v14, 7
  %v16 = vsub.s32 0, %v15
  %v17 = vrot.slane %v12, %v16
  %v18 = vlaneseq
  %v19 = vshrl.u32 %v18, 7
  %v20 = vsub.s32 1, %v19
  %v21 = vrot.slane %v12, %v20
  %v22 = vcombine.low %v17, %v21
  %v24 = vunpack.c.l.s4 1983009808
  %v25 = vunpack.c.0.s8 %v24
  %v26 = vlaneseq
  %v27 = vshrl.u32 %v26, 7
  %v28 = vsub.s32 %v25, %v27
  %v29 = vrot.slane %v22, %v28
  %v31 = vadd.f32 %v11, %v29
  %32 = vst [vmem:[%s2] sm:$0xf] %v31
  // Predicated region
  $region10: #{positional_encoding.1} parent=0 // pred_check
    _
  $region11: #{positional_encoding.1} parent=0 // pred_check_branch
    %34 = sbr.rel (0) target = $region13
  $region12: #{positional_encoding.1} parent=0 // pred_region
    _
  $region13: #{positional_encoding.1} parent=0 // pred_fallthru
    _
  // Predicated region
  $region14: #{positional_encoding.1} parent=0 // pred_check
    _
  $region15: #{positional_encoding.1} parent=0 // pred_check_branch
    %36 = sbr.rel (0) target = $region17
  $region16: #{positional_encoding.1} parent=0 // pred_region
    _
  $region17: #{positional_encoding.1} parent=0 // pred_fallthru
    _

</llo_original>
